<compile_context>
chip_gen: v7x
topology: tpu7x:2x2x1
jax: 0.10.0
libtpu: 0.0.40
codegen_flags: <defaults>
</compile_context>

<pallas_src>
import functools

import jax
import jax.numpy as jnp
from jax.experimental import pallas as pl
from jax.experimental.pallas import tpu as pltpu


def _round_up(x, m):
    return ((x + m - 1) // m) * m


def _cdiv(a, b):
    return -(-a // b)


def _dce_kernel(logits_ref, enc_ref, out_ref, *, batch):
    """One batch tile: emit per-block partial sums of masked / disagreement CE."""
    logits = logits_ref[...].astype(jnp.float32)   # (tb, C), class dim on lanes
    enc = enc_ref[...]                             # (tb, 1) int32: label or -label-1
    tb, c = logits.shape
    inv_cm1 = 1.0 / (c - 1)

    # Global row index of each sublane; rows >= batch are garbage (partial tail
    # block, no host-side padding) and must contribute exactly zero.
    row = jax.lax.broadcasted_iota(jnp.int32, (tb, 1), 0) + pl.program_id(0) * tb
    valid = row < batch                                                  # (tb, 1)

    # Decode the packed label/mask stream.
    is_pos = enc >= 0
    label = jnp.where(is_pos, enc, -enc - 1)                             # (tb, 1)
    posf = (valid & is_pos).astype(jnp.float32)                          # (tb, 1)
    negf = (valid & jnp.logical_not(is_pos)).astype(jnp.float32)         # (tb, 1)

    # Zero garbage tail rows BEFORE exp so inf/NaN can't survive the masking.
    logits = jnp.where(valid, logits, 0.0)

    # Numerically stable logsumexp over classes (lane axis).
    m = jnp.max(logits, axis=1, keepdims=True)
    lse = jnp.log(jnp.sum(jnp.exp(logits - m), axis=1, keepdims=True)) + m

    # Fused weighted reduce (posf/negf are disjoint per row):
    #   pos rows: target = logits[label]            -> lse - target = ce_p
    #   neg rows: target = sum_{j!=label} l_j/(C-1) -> lse - target = ce_n
    col = jax.lax.broadcasted_iota(jnp.int32, (tb, c), 1)
    coef = jnp.where(col == label, posf, negf * inv_cm1)                 # (tb, C)
    target = jnp.sum(logits * coef, axis=1, keepdims=True)               # (tb, 1)

    diff = lse - target
    sum_p = jnp.sum(posf * diff, keepdims=True)                          # (1, 1)
    sum_n = jnp.sum(negf * diff, keepdims=True)                          # (1, 1)

    # Lane-dense (8,128) output vreg: [0,0] = pos partial, [0,1] = neg partial.
    r8 = jax.lax.broadcasted_iota(jnp.int32, (8, 128), 0)
    ln = jax.lax.broadcasted_iota(jnp.int32, (8, 128), 1)
    pick_p = ((r8 == 0) & (ln == 0)).astype(jnp.float32)
    pick_n = ((r8 == 0) & (ln == 1)).astype(jnp.float32)
    out_ref[...] = pick_p * sum_p + pick_n * sum_n


@functools.partial(jax.jit, static_argnames=("alpha",))
def dce_loss_pallas(logits, labels, mask, alpha=None):
    """logits: (B, C) float (f32 or bf16); labels: (B,) int; mask: (B,) bool."""
    B, C = logits.shape
    assert C >= 2, "DCE loss needs at least 2 classes (divides by C-1)"

    maskb = mask.astype(jnp.bool_)
    labels_i = labels.astype(jnp.int32)
    # Single side stream: sign bit carries the mask, magnitude carries the label.
    enc = jnp.where(maskb, labels_i, -labels_i - 1).reshape(B, 1)

    itemsize = jnp.dtype(logits.dtype).itemsize
    c_pad = _round_up(C, 128)                       # lanes actually occupied in VMEM

    # Batch tile: ~2 MiB of (lane-padded) logits per block, capped at 4096 rows.
    target_block_bytes = 2 << 20
    tb = max(8, ((target_block_bytes // (c_pad * itemsize)) // 8) * 8)
    tb = min(tb, 4096)
    if B <= tb:
        if B >= 16:
            tb = _round_up(_cdiv(B, 2), 8)          # >=2 blocks: v7x megacore split
        else:
            tb = _round_up(B, 8)
    grid = _cdiv(B, tb)

    # VMEM budget from the real double-buffered footprint (lane-padded blocks).
    logits_block_bytes = tb * c_pad * itemsize
    enc_block_bytes = tb * 128 * 4                  # (tb,1) pads to 128 lanes
    out_block_bytes = 8 * 128 * 4
    vmem_need = 2 * (logits_block_bytes + enc_block_bytes + out_block_bytes) + (2 << 20)
    vmem_limit = int(min(max(vmem_need, 16 << 20), 40 << 20))   # v7x-safe cap

    kernel = functools.partial(_dce_kernel, batch=B)
    out = pl.pallas_call(
        kernel,
        out_shape=jax.ShapeDtypeStruct((8, grid * 128), jnp.float32),
        grid=(grid,),
        in_specs=[
            pl.BlockSpec((tb, C), lambda i: (i, 0)),    # logits tile (native dtype)
            pl.BlockSpec((tb, 1), lambda i: (i, 0)),    # packed label/mask stream
        ],
        out_specs=pl.BlockSpec((8, 128), lambda i: (0, i)),
        compiler_params=pltpu.CompilerParams(
            dimension_semantics=("parallel",),
            vmem_limit_bytes=vmem_limit,
        ),
    )(logits, enc)

    # Tiny epilogue in XLA: combine per-block partials and apply alpha / mean.
    partials = out.reshape(8, grid, 128).sum(axis=(0, 1))       # (128,)
    sum_p = partials[0]
    sum_n = partials[1]
    if alpha is None:
        a = 1.0 / (1.0 + jnp.sum((~maskb).astype(jnp.float32)))
    else:
        a = jnp.float32(alpha)                                  # trace-time static
    return (sum_p + a * sum_n) / jnp.float32(B)


class DCELoss:
    """JAX/Pallas port of the PyTorch DCELoss module (defaults only)."""

    def __init__(self, weight=None, use_random_vectors=False, alpha=None):
        assert weight is None, "per-class weight not supported"            # TODO(synk)
        assert not use_random_vectors, "use_random_vectors not supported"  # TODO(synk)
        self.alpha = alpha

    def __call__(self, logits, labels, mask):
        return dce_loss_pallas(logits, labels, mask, alpha=self.alpha)


def _dce_loss_ref(logits, labels, mask, alpha=None):
    """Pure-JAX reference implementing the same unified formula."""
    B, C = logits.shape
    logits = logits.astype(jnp.float32)
    onehot = jax.nn.one_hot(labels, C, dtype=jnp.float32)
    lse = jax.nn.logsumexp(logits, axis=1)
    ce_p = lse - jnp.sum(logits * onehot, axis=1)
    ce_n = lse - jnp.sum(logits * (1.0 - onehot), axis=1) / (C - 1)
    maskf = mask.astype(jnp.float32)
    n_neg = jnp.sum(1.0 - maskf)
    a = jnp.float32(alpha) if alpha is not None else 1.0 / (1.0 + n_neg)
    per_sample = maskf * ce_p + (1.0 - maskf) * a * ce_n
    return jnp.mean(per_sample)


if __name__ == "__main__":
    key = jax.random.PRNGKey(0)
    k1, k2, k3, k4, k5, k6 = jax.random.split(key, 6)

    B, C = 8, 32
    logits = jax.random.normal(k1, (B, C), dtype=jnp.float32)
    labels = jax.random.randint(k2, (B,), 0, C, dtype=jnp.int32)
    # mixed mask: True -> standard CE term, False -> disagreement CE term
    mask = jnp.array([True, False, True, False, True, True, False, True])

    loss_fn = DCELoss()
    loss = jax.block_until_ready(loss_fn(logits, labels, mask))
    ref = _dce_loss_ref(logits, labels, mask)
    assert jnp.allclose(loss, ref, atol=1e-5, rtol=1e-5), (loss, ref)

    # all-True and all-False mask branches
    for m in (jnp.ones((B,), bool), jnp.zeros((B,), bool)):
        got = jax.block_until_ready(loss_fn(logits, labels, m))
        assert jnp.allclose(got, _dce_loss_ref(logits, labels, m), atol=1e-5, rtol=1e-5)

    # explicit (trace-time static) alpha
    loss_a = jax.block_until_ready(DCELoss(alpha=0.25)(logits, labels, mask))
    assert jnp.allclose(loss_a, _dce_loss_ref(logits, labels, mask, alpha=0.25),
                        atol=1e-5, rtol=1e-5)

    # non-multiple-of-8 batch + non-multiple-of-128 classes: partial tail block
    B2, C2 = 13, 40
    logits2 = jax.random.normal(k3, (B2, C2), dtype=jnp.float32)
    labels2 = jax.random.randint(k4, (B2,), 0, C2, dtype=jnp.int32)
    mask2 = (jnp.arange(B2) % 3 != 0)
    got2 = jax.block_until_ready(dce_loss_pallas(logits2, labels2, mask2))
    assert jnp.allclose(got2, _dce_loss_ref(logits2, labels2, mask2), atol=1e-5, rtol=1e-5)

    # B >= 16 exercises the 2-block (v7x megacore) split with a ragged tail block
    B3, C3 = 20, 32
    logits3 = jax.random.normal(k5, (B3, C3), dtype=jnp.float32)
    labels3 = jax.random.randint(k6, (B3,), 0, C3, dtype=jnp.int32)
    mask3 = (jnp.arange(B3) % 4 != 0)
    got3 = jax.block_until_ready(dce_loss_pallas(logits3, labels3, mask3))
    assert jnp.allclose(got3, _dce_loss_ref(logits3, labels3, mask3), atol=1e-5, rtol=1e-5)

    # bf16 logits stay bf16 in HBM; kernel upcasts in-register
    logits_bf = logits.astype(jnp.bfloat16)
    got_bf = jax.block_until_ready(dce_loss_pallas(logits_bf, labels, mask))
    ref_bf = _dce_loss_ref(logits_bf.astype(jnp.float32), labels, mask)
    assert jnp.allclose(got_bf, ref_bf, atol=1e-4, rtol=1e-4), (got_bf, ref_bf)

    print("KERNEL_OK")
</pallas_src>

<mosaic_0001>
module attributes {stable_mosaic.version = 11 : i64} {
  func.func @_dce_kernel(%arg0: i32, %arg1: memref<8x32xf32, #tpu.memory_space<vmem>>, %arg2: memref<8x1xi32, #tpu.memory_space<vmem>>, %arg3: memref<8x128xf32, #tpu.memory_space<vmem>>) attributes {dimension_semantics = [#tpu.dimension_semantics<parallel>], iteration_bounds = array<i64: 1>, scalar_prefetch = 0 : i64, scratch_operands = 0 : i64, tpu.core_type = #tpu.core_type<tc>, window_params = [{transform_indices = @transform_0, window_bounds = array<i64: 8, 32>}, {transform_indices = @transform_1, window_bounds = array<i64: 8, 1>}, {transform_indices = @transform_2, window_bounds = array<i64: 8, 128>}]} {
    %c0 = arith.constant 0 : index
    %c0_0 = arith.constant 0 : index
    %0 = vector.load %arg1[%c0, %c0_0] : memref<8x32xf32, #tpu.memory_space<vmem>>, vector<8x32xf32>
    %c0_1 = arith.constant 0 : index
    %c0_2 = arith.constant 0 : index
    %1 = vector.load %arg2[%c0_1, %c0_2] : memref<8x1xi32, #tpu.memory_space<vmem>>, vector<8x1xi32>
    %2 = tpu.iota {dimensions = array<i32: 0>} : vector<8x1xi32>
    %c8_i32 = arith.constant 8 : i32
    %3 = arith.muli %arg0, %c8_i32 : i32
    %4 = vector.broadcast %3 : i32 to vector<8x1xi32>
    %5 = arith.addi %2, %4 : vector<8x1xi32>
    %c8_i32_3 = arith.constant 8 : i32
    %6 = vector.broadcast %c8_i32_3 : i32 to vector<8x1xi32>
    %7 = arith.cmpi slt, %5, %6 : vector<8x1xi32>
    %c0_i32 = arith.constant 0 : i32
    %8 = vector.broadcast %c0_i32 : i32 to vector<8x1xi32>
    %9 = arith.cmpi sge, %1, %8 : vector<8x1xi32>
    %c0_i32_4 = arith.constant 0 : i32
    %10 = vector.broadcast %c0_i32_4 : i32 to vector<8x1xi32>
    %11 = arith.subi %10, %1 : vector<8x1xi32>
    %c1_i32 = arith.constant 1 : i32
    %12 = vector.broadcast %c1_i32 : i32 to vector<8x1xi32>
    %13 = arith.subi %11, %12 : vector<8x1xi32>
    %14 = arith.select %9, %1, %13 : vector<8x1xi1>, vector<8x1xi32>
    %15 = arith.andi %7, %9 : vector<8x1xi1>
    %16 = arith.extui %15 : vector<8x1xi1> to vector<8x1xi32>
    %17 = arith.sitofp %16 : vector<8x1xi32> to vector<8x1xf32>
    %cst = arith.constant dense<true> : vector<8x1xi1>
    %18 = arith.xori %9, %cst : vector<8x1xi1>
    %19 = arith.andi %7, %18 : vector<8x1xi1>
    %20 = arith.extui %19 : vector<8x1xi1> to vector<8x1xi32>
    %21 = arith.sitofp %20 : vector<8x1xi32> to vector<8x1xf32>
    %cst_5 = arith.constant 0.000000e+00 : f32
    %22 = vector.shape_cast %7 : vector<8x1xi1> to vector<8x1xi1>
    %23 = vector.broadcast %22 : vector<8x1xi1> to vector<8x32xi1>
    %24 = vector.broadcast %cst_5 : f32 to vector<8x32xf32>
    %25 = arith.select %23, %0, %24 : vector<8x32xi1>, vector<8x32xf32>
    %cst_6 = arith.constant dense<0xFF800000> : vector<8xf32>
    %26 = vector.multi_reduction <maximumf>, %25, %cst_6 [1] : vector<8x32xf32> to vector<8xf32>
    %27 = vector.shape_cast %26 : vector<8xf32> to vector<8x1xf32>
    %28 = vector.broadcast %27 : vector<8x1xf32> to vector<8x32xf32>
    %29 = arith.subf %25, %28 : vector<8x32xf32>
    %30 = math.exp %29 : vector<8x32xf32>
    %cst_7 = arith.constant dense<0.000000e+00> : vector<8xf32>
    %31 = vector.multi_reduction <add>, %30, %cst_7 [1] : vector<8x32xf32> to vector<8xf32>
    %32 = vector.shape_cast %31 : vector<8xf32> to vector<8x1xf32>
    %33 = math.log %32 : vector<8x1xf32>
    %34 = arith.addf %33, %27 : vector<8x1xf32>
    %35 = tpu.iota {dimensions = array<i32: 1>} : vector<8x32xi32>
    %36 = vector.broadcast %14 : vector<8x1xi32> to vector<8x32xi32>
    %37 = arith.cmpi eq, %35, %36 : vector<8x32xi32>
    %cst_8 = arith.constant 0.0322580636 : f32
    %38 = vector.broadcast %cst_8 : f32 to vector<8x1xf32>
    %39 = arith.mulf %21, %38 : vector<8x1xf32>
    %40 = vector.shape_cast %17 : vector<8x1xf32> to vector<8x1xf32>
    %41 = vector.broadcast %40 : vector<8x1xf32> to vector<8x32xf32>
    %42 = vector.shape_cast %39 : vector<8x1xf32> to vector<8x1xf32>
    %43 = vector.broadcast %42 : vector<8x1xf32> to vector<8x32xf32>
    %44 = arith.select %37, %41, %43 : vector<8x32xi1>, vector<8x32xf32>
    %45 = arith.mulf %25, %44 : vector<8x32xf32>
    %cst_9 = arith.constant dense<0.000000e+00> : vector<8xf32>
    %46 = vector.multi_reduction <add>, %45, %cst_9 [1] : vector<8x32xf32> to vector<8xf32>
    %47 = vector.shape_cast %46 : vector<8xf32> to vector<8x1xf32>
    %48 = arith.subf %34, %47 : vector<8x1xf32>
    %49 = arith.mulf %17, %48 : vector<8x1xf32>
    %50 = vector.shape_cast %49 : vector<8x1xf32> to vector<1x8x1xf32>
    %cst_10 = arith.constant dense<0.000000e+00> : vector<1xf32>
    %51 = vector.multi_reduction <add>, %50, %cst_10 [1, 2] : vector<1x8x1xf32> to vector<1xf32>
    %52 = vector.shape_cast %51 : vector<1xf32> to vector<1x1x1xf32>
    %53 = vector.extract %52[0, 0, 0] : f32 from vector<1x1x1xf32>
    %54 = vector.broadcast %53 : f32 to vector<1x1xf32>
    %55 = arith.mulf %21, %48 : vector<8x1xf32>
    %56 = vector.shape_cast %55 : vector<8x1xf32> to vector<1x8x1xf32>
    %cst_11 = arith.constant dense<0.000000e+00> : vector<1xf32>
    %57 = vector.multi_reduction <add>, %56, %cst_11 [1, 2] : vector<1x8x1xf32> to vector<1xf32>
    %58 = vector.shape_cast %57 : vector<1xf32> to vector<1x1x1xf32>
    %59 = vector.extract %58[0, 0, 0] : f32 from vector<1x1x1xf32>
    %60 = vector.broadcast %59 : f32 to vector<1x1xf32>
    %61 = tpu.iota {dimensions = array<i32: 0>} : vector<8x128xi32>
    %62 = tpu.iota {dimensions = array<i32: 1>} : vector<8x128xi32>
    %c0_i32_12 = arith.constant 0 : i32
    %63 = vector.broadcast %c0_i32_12 : i32 to vector<8x128xi32>
    %64 = arith.cmpi eq, %61, %63 : vector<8x128xi32>
    %c0_i32_13 = arith.constant 0 : i32
    %65 = vector.broadcast %c0_i32_13 : i32 to vector<8x128xi32>
    %66 = arith.cmpi eq, %62, %65 : vector<8x128xi32>
    %67 = arith.andi %64, %66 : vector<8x128xi1>
    %68 = arith.extui %67 : vector<8x128xi1> to vector<8x128xi32>
    %69 = arith.sitofp %68 : vector<8x128xi32> to vector<8x128xf32>
    %c0_i32_14 = arith.constant 0 : i32
    %70 = vector.broadcast %c0_i32_14 : i32 to vector<8x128xi32>
    %71 = arith.cmpi eq, %61, %70 : vector<8x128xi32>
    %c1_i32_15 = arith.constant 1 : i32
    %72 = vector.broadcast %c1_i32_15 : i32 to vector<8x128xi32>
    %73 = arith.cmpi eq, %62, %72 : vector<8x128xi32>
    %74 = arith.andi %71, %73 : vector<8x128xi1>
    %75 = arith.extui %74 : vector<8x128xi1> to vector<8x128xi32>
    %76 = arith.sitofp %75 : vector<8x128xi32> to vector<8x128xf32>
    %77 = vector.broadcast %54 : vector<1x1xf32> to vector<8x128xf32>
    %78 = arith.mulf %69, %77 : vector<8x128xf32>
    %79 = vector.broadcast %60 : vector<1x1xf32> to vector<8x128xf32>
    %80 = arith.mulf %76, %79 : vector<8x128xf32>
    %81 = arith.addf %78, %80 : vector<8x128xf32>
    %c0_16 = arith.constant 0 : index
    %c0_17 = arith.constant 0 : index
    %82 = vector.load %arg3[%c0_16, %c0_17] : memref<8x128xf32, #tpu.memory_space<vmem>>, vector<8x128xf32>
    tpu.vector_store %arg3[%c0_16, %c0_17], %81 {strides = array<i32>} : memref<8x128xf32, #tpu.memory_space<vmem>>, vector<8x128xf32>,
    return
  }
  func.func @transform_0(%arg0: i32) -> (i32, i32) {
    %c0_i32 = arith.constant 0 : i32
    %c0_i32_0 = arith.constant 0 : i32
    return %arg0, %c0_i32 : i32, i32
  }
  func.func @transform_1(%arg0: i32) -> (i32, i32) {
    %c0_i32 = arith.constant 0 : i32
    %c0_i32_0 = arith.constant 0 : i32
    return %arg0, %c0_i32 : i32, i32
  }
  func.func @transform_2(%arg0: i32) -> (i32, i32) {
    %c0_i32 = arith.constant 0 : i32
    %c0_i32_0 = arith.constant 0 : i32
    return %c0_i32, %arg0 : i32, i32
  }
}

</mosaic_0001>

<llo_original>
// kernel: dce_loss_pallas.1
$region0: #{dce_loss_pallas.1}
  #allocation0 [shape = 'u32[]', space=smem, size = 0x4, offset = 0x4, fixed_abs, tag = 'smem constant byte address 0x4 - core index']
  #allocation1 [shape = 'u32[144,128]{1,0:T(1,128)}', space=vmem, size = 0x12000, scoped, tag = 'internal scratch']
  %s0 = inlined_call_operand.vmem [shape: f32[8,32], index: 0, kind: input, shape index: {}]
  %s1 = inlined_call_operand.vmem [shape: s32[8,1], index: 1, kind: input, shape index: {}]
  %s2 = inlined_call_operand.vmem [shape: f32[8,128], index: 2, kind: output, shape index: {}]
  %s3 = sld [smem:[#allocation0]]
  $region18: #{dce_loss_pallas.1} parent=0
    _
  %s5 = ssub.s32 1, %s3
  %s6 = scalar_select 0, %s5, %s3
  // Predicated region
  $region2: #{dce_loss_pallas.1} parent=0 // pred_check
    _
  $region3: #{dce_loss_pallas.1} parent=0 // pred_check_branch
    %8 = sbr.rel (0) target = $region5
  $region4: #{dce_loss_pallas.1} parent=0 // pred_region
    _
  $region5: #{dce_loss_pallas.1} parent=0 // pred_fallthru
    _
  // Predicated region
  $region6: #{dce_loss_pallas.1} parent=0 // pred_check
    _
  $region7: #{dce_loss_pallas.1} parent=0 // pred_check_branch
    %10 = sbr.rel (0) target = $region9
  $region8: #{dce_loss_pallas.1} parent=0 // pred_region
    _
  $region9: #{dce_loss_pallas.1} parent=0 // pred_fallthru
    _
  %v11 = vld [vmem:[%s0] sm:$0xff]
  %v12 = vld [vmem:[%s1] sm:$0xff]
  %v13 = vlaneseq
  %v14 = vshrl.u32 %v13, 7
  %s15 = smul.u32 0, 8
  %v16 = vstv %s15
  %v17 = vadd.s32 %v14, %v16
  %vm18 = vcmp.lt.s32.totalorder %v17, 8
  %vm19 = vcmp.ge.s32.totalorder %v12, 0
  %v20 = vsub.s32 0, %v12
  %v21 = vsub.s32 %v20, 1
  %v22 = vsel %vm19, %v12, %v21
  %vm23 = vmand %vm18, %vm19
  %v24 = vsel %vm23, 1, 0
  %v25 = vcvt.s32.f32 %v24
  %vm26 = vmxor %vm19, 1
  %vm27 = vmand %vm18, %vm26
  %v28 = vsel %vm27, 1, 0
  %v29 = vcvt.s32.f32 %v28
  %v30 = vsel %vm18, 1, 0
  %vm31 = vcmp.eq.s32.totalorder %v30, 1
  %v32 = vsel %vm31, %v11, 0.0
  %vm33 = vcmask 261120
  %v34 = vsel %vm33, %v32, -inf
  %35 = vmax.xlane.f32.xlu0 %v34
  %v36 = vpop.xlane.xlu0 %35
  %v37 = vsub.f32 %v32, %v36
  %v38 = vmul.f32 %v37, 1.442695
  %v39 = vpow.pop %v38
  %v40 = vsel %vm33, %v39, 0.0
  %41 = vadd.xlane.f32.xlu0 %v40
  %v42 = vpop.xlane.xlu0 %41
  %v43 = vlog2.pop %v42
  %v44 = vmul.f32 %v43, 0.6931472
  %v45 = vadd.f32 %v44, %v36
  %v46 = vlaneseq
  %v47 = vand.u32 %v46, 127
  %48 = vset.pattern.permute.xlu0 0
  %49 = vperm.xlu0 %48, %v22
  %v50 = vpop.permute.xlu0 %49
  %vm51 = vcmp.eq.s32.totalorder %v47, %v50
  %v52 = vmul.f32 %v29, 0.032258064
  %54 = vset.pattern.permute.xlu0 0
  %55 = vperm.xlu0 %54, %v25
  %v56 = vpop.permute.xlu0 %55
  %59 = vset.pattern.permute.xlu0 0
  %60 = vperm.xlu0 %59, %v52
  %v61 = vpop.permute.xlu0 %60
  %v63 = vsel %vm51, %v56, %v61
  %v64 = vmul.f32 %v32, %v63
  %v65 = vsel %vm33, %v64, 0.0
  %66 = vadd.xlane.f32.xlu0 %v65
  %v67 = vpop.xlane.xlu0 %66
  %v68 = vsub.f32 %v45, %v67
  %v69 = vmul.f32 %v25, %v68
  %vm70 = vcmask 7168
  %v71 = vsel %vm70, %v69, 0.0
  %72 = vadd.xlane.f32.xlu0 %v71
  %v73 = vpop.xlane.xlu0 %72
  %v74 = vrot.slane %v73, 4
  %v75 = vadd.f32 %v73, %v74
  %v76 = vrot.slane %v75, 2
  %v77 = vadd.f32 %v75, %v76
  %v78 = vrot.slane %v77, 1
  %v79 = vadd.f32 %v77, %v78
  %s80 = vtos %v79
  %v81 = vmul.f32 %v29, %v68
  %v82 = vsel %vm70, %v81, 0.0
  %83 = vadd.xlane.f32.xlu0 %v82
  %v84 = vpop.xlane.xlu0 %83
  %v85 = vrot.slane %v84, 4
  %v86 = vadd.f32 %v84, %v85
  %v87 = vrot.slane %v86, 2
  %v88 = vadd.f32 %v86, %v87
  %v89 = vrot.slane %v88, 1
  %v90 = vadd.f32 %v88, %v89
  %s91 = vtos %v90
  %vm92 = vcmp.eq.s32.totalorder %v14, 0
  %vm93 = vcmp.eq.s32.totalorder %v47, 0
  %vm94 = vmand %vm92, %vm93
  %v95 = vsel %vm94, 1, 0
  %v96 = vcvt.s32.f32 %v95
  %vm97 = vcmp.eq.s32.totalorder %v47, 1
  %vm98 = vmand %vm92, %vm97
  %v99 = vsel %vm98, 1, 0
  %v100 = vcvt.s32.f32 %v99
  %v101 = vstv %s80
  %v102 = vmul.f32 %v96, %v101
  %v103 = vstv %s91
  %v104 = vmul.f32 %v100, %v103
  %v105 = vadd.f32 %v102, %v104
  %106 = vst [vmem:[%s2] sm:$0xff] %v105
  // Predicated region
  $region10: #{dce_loss_pallas.1} parent=0 // pred_check
    _
  $region11: #{dce_loss_pallas.1} parent=0 // pred_check_branch
    %108 = sbr.rel (0) target = $region13
  $region12: #{dce_loss_pallas.1} parent=0 // pred_region
    _
  $region13: #{dce_loss_pallas.1} parent=0 // pred_fallthru
    _
  // Predicated region
  $region14: #{dce_loss_pallas.1} parent=0 // pred_check
    _
  $region15: #{dce_loss_pallas.1} parent=0 // pred_check_branch
    %110 = sbr.rel (0) target = $region17
  $region16: #{dce_loss_pallas.1} parent=0 // pred_region
    _
  $region17: #{dce_loss_pallas.1} parent=0 // pred_fallthru
    _

</llo_original>
